<compile_context>
chip_gen: v7x
topology: tpu7x:2x2x1
jax: 0.10.0
libtpu: 0.0.40
codegen_flags: <defaults>
</compile_context>

<pallas_src>
import jax
import jax.numpy as jnp
from jax import lax
from jax.experimental import pallas as pl
from jax.experimental.pallas import tpu as pltpu


# ----------------------------------------------------------------------------
# Kernel 1: bulk input projection  XW = reshape(xs, (T*B, H)) @ W
# Fully parallel over row blocks; this is where most of the FLOPs live and it
# runs at full MXU efficiency instead of sitting on the serial recurrence.
# ----------------------------------------------------------------------------
def xw_proj_kernel(x_ref, w_ref, o_ref):
    # x_ref: (tile_m, H)   w_ref: (H, H)   o_ref: (tile_m, H)
    o_ref[...] = jnp.dot(
        x_ref[...], w_ref[...], preferred_element_type=jnp.float32
    ).astype(o_ref.dtype)


def xw_project(xs, W, tt):
    """xs: (T, B, H), W: (H, H) -> (T, B, H) with xw[t] = xs[t] @ W."""
    T, B, H = xs.shape
    x2d = xs.reshape(T * B, H)
    tile_m = tt * B
    xw2d = pl.pallas_call(
        xw_proj_kernel,
        out_shape=jax.ShapeDtypeStruct((T * B, H), jnp.float32),
        grid=(T // tt,),
        in_specs=[
            pl.BlockSpec((tile_m, H), lambda i: (i, 0)),      # streamed rows
            pl.BlockSpec((H, H), lambda i: (0, 0)),           # W resident
        ],
        out_specs=pl.BlockSpec((tile_m, H), lambda i: (i, 0)),
        compiler_params=pltpu.CompilerParams(
            dimension_semantics=("parallel",),                # independent blocks
        ),
    )(x2d, W.astype(jnp.float32))
    return xw2d.reshape(T, B, H)


# ----------------------------------------------------------------------------
# Kernel 2: the serial recurrence.  One grid step == Tt timesteps.
# Per step only  h = tanh(xw[t] + h @ U)  sits on the critical path.
# ----------------------------------------------------------------------------
def rnn_block_kernel(xw_ref, h0_ref, u_ref, hseq_ref, h_scr):
    """
    xw_ref:   (Tt, B, H)  precomputed x@W tiles for this timestep block (streamed)
    h0_ref:   (B, H)      initial hidden state (VMEM-resident, read at block 0)
    u_ref:    (H, H)      recurrent weight U   (VMEM-resident across all blocks)
    hseq_ref: (Tt, B, H)  output hidden states for this block
    h_scr:    (B, H) f32  carried hidden state across grid steps
    """
    blk = pl.program_id(0)

    @pl.when(blk == 0)
    def _():
        h_scr[...] = h0_ref[...].astype(jnp.float32)

    u = u_ref[...]            # hoisted: single VMEM read of U per block
    h = h_scr[...]
    tt = xw_ref.shape[0]

    def step(t, h):
        # Single K=H MXU matmul on the serial chain, f32 accumulate,
        # f32 add + tanh epilogue (VPU/EUP; mandatory f32 on v5e).
        y = xw_ref[t].astype(jnp.float32) + jnp.dot(
            h, u, preferred_element_type=jnp.float32
        )
        h_new = jnp.tanh(y)
        hseq_ref[t] = h_new.astype(hseq_ref.dtype)
        return h_new

    # Unrolled so the LLO scheduler sees the whole block and can overlap the
    # MXU push of step t+1 with the epilogue of step t.
    h = lax.fori_loop(0, tt, step, h, unroll=True)
    h_scr[...] = h            # carry to the next grid step


def _pick_tt(T):
    """Largest timestep-block size (<=32) that divides T."""
    for cand in (32, 16, 8, 4, 2, 1):
        if T % cand == 0:
            return cand
    return 1


def simple_rnn_sequence(xs, h0, W, U):
    """Run the cell over a whole sequence.

    xs: (T, B, H), h0: (B, H), W/U: (H, H).
    Returns hseq: (T, B, H) with hseq[t] = hidden state after step t.
    """
    T, B, H = xs.shape
    assert h0.shape == (B, H) and W.shape == (H, H) and U.shape == (H, H)

    tt = _pick_tt(T)

    # Phase 1: bulk, parallel input projection (off the serial path).
    xw = xw_project(xs, W, tt)                                 # (T, B, H) f32

    # Phase 2: serial recurrence, Tt timesteps per grid invocation.
    hseq = pl.pallas_call(
        rnn_block_kernel,
        out_shape=jax.ShapeDtypeStruct((T, B, H), xs.dtype),
        grid=(T // tt,),
        in_specs=[
            # Streamed per-block xw tile (double-buffered by the pipeline).
            pl.BlockSpec((tt, B, H), lambda i: (i, 0, 0)),
            # Constant index maps -> fetched once, VMEM-resident.
            pl.BlockSpec((B, H), lambda i: (0, 0)),
            pl.BlockSpec((H, H), lambda i: (0, 0)),
        ],
        out_specs=pl.BlockSpec((tt, B, H), lambda i: (i, 0, 0)),
        scratch_shapes=[pltpu.VMEM((B, H), jnp.float32)],      # carried h
        compiler_params=pltpu.CompilerParams(
            dimension_semantics=("arbitrary",),                # true recurrence
        ),
    )(xw, h0, U.astype(jnp.float32))
    return hseq


def simple_rnn_cell(inputs, state, W, U):
    """Pallas equivalent of SimpleRNNCell.forward (single step == T = 1).

    inputs: (B, H), state: (c, h) each (B, H), W/U: (H, H).
    Returns (new_h, (new_c, new_h)) matching the PyTorch module.
    """
    c, h = state
    del c  # the module's forward never reads c
    hseq = simple_rnn_sequence(inputs[None], h, W, U)
    new_h = hseq[0]
    new_c = new_h  # aliased, exactly like the PyTorch module
    return new_h, (new_c, new_h)


def xavier_uniform(key, shape, dtype=jnp.float32):
    fan_in, fan_out = shape
    bound = (6.0 / (fan_in + fan_out)) ** 0.5
    return jax.random.uniform(key, shape, dtype=dtype, minval=-bound, maxval=bound)


if __name__ == "__main__":
    hidden_size = 32
    batch = 8
    seq_len = 8

    key = jax.random.PRNGKey(0)
    k_w, k_u, k_x, k_c, k_h, k_xs = jax.random.split(key, 6)

    # Deterministic parameter init (shapes from the module's __init__).
    W = xavier_uniform(k_w, (hidden_size, hidden_size))
    U = xavier_uniform(k_u, (hidden_size, hidden_size))

    inputs = jax.random.normal(k_x, (batch, hidden_size), dtype=jnp.float32)
    c0 = jax.random.normal(k_c, (batch, hidden_size), dtype=jnp.float32)
    h0 = jax.random.normal(k_h, (batch, hidden_size), dtype=jnp.float32)

    # ---- single step: exact module semantics ----
    new_h, (new_c, new_h2) = simple_rnn_cell(inputs, (c0, h0), W, U)
    jax.block_until_ready(new_h)

    ref = jnp.tanh(inputs @ W + h0 @ U)
    assert jnp.allclose(new_h, ref, atol=1e-5, rtol=1e-5)
    assert jnp.array_equal(new_c, new_h) and jnp.array_equal(new_h2, new_h)

    # ---- full recurrence (x@W hoisted + blocked serial h@U+tanh chain) ----
    xs = jax.random.normal(k_xs, (seq_len, batch, hidden_size), dtype=jnp.float32)
    hseq = simple_rnn_sequence(xs, h0, W, U)
    jax.block_until_ready(hseq)

    def step(h, x):
        h_new = jnp.tanh(x @ W + h @ U)
        return h_new, h_new

    _, hs_ref = jax.lax.scan(step, h0, xs)
    assert jnp.allclose(hseq, hs_ref, atol=1e-4, rtol=1e-4)

    print("KERNEL_OK")
</pallas_src>

<mosaic_0001>
module attributes {stable_mosaic.version = 11 : i64} {
  func.func @xw_proj_kernel(%arg0: i32, %arg1: memref<8x32xf32, #tpu.memory_space<vmem>>, %arg2: memref<32x32xf32, #tpu.memory_space<vmem>>, %arg3: memref<8x32xf32, #tpu.memory_space<vmem>>) attributes {dimension_semantics = [#tpu.dimension_semantics<parallel>], iteration_bounds = array<i64: 1>, scalar_prefetch = 0 : i64, scratch_operands = 0 : i64, tpu.core_type = #tpu.core_type<tc>, window_params = [{transform_indices = @transform_0, window_bounds = array<i64: 8, 32>}, {pipeline_mode = #tpu.pipeline_mode<synchronous>, transform_indices = @transform_1, window_bounds = array<i64: 32, 32>}, {transform_indices = @transform_2, window_bounds = array<i64: 8, 32>}]} {
    %c0 = arith.constant 0 : index
    %c0_0 = arith.constant 0 : index
    %0 = vector.load %arg1[%c0, %c0_0] : memref<8x32xf32, #tpu.memory_space<vmem>>, vector<8x32xf32>
    %c0_1 = arith.constant 0 : index
    %c0_2 = arith.constant 0 : index
    %1 = vector.load %arg2[%c0_1, %c0_2] : memref<32x32xf32, #tpu.memory_space<vmem>>, vector<32x32xf32>
    %cst = arith.constant dense<0.000000e+00> : vector<8x32xf32>
    %2 = tpu.matmul %0, %1, %cst {dimension_numbers = #tpu.dot_dimension_numbers<[1], [0], [0], [1], [0, 0, 1, 1], [], []>} : vector<8x32xf32>, vector<32x32xf32>, vector<8x32xf32> -> vector<8x32xf32>
    %c0_3 = arith.constant 0 : index
    %c0_4 = arith.constant 0 : index
    %3 = vector.load %arg3[%c0_3, %c0_4] : memref<8x32xf32, #tpu.memory_space<vmem>>, vector<8x32xf32>
    tpu.vector_store %arg3[%c0_3, %c0_4], %2 {strides = array<i32>} : memref<8x32xf32, #tpu.memory_space<vmem>>, vector<8x32xf32>,
    return
  }
  func.func @transform_0(%arg0: i32) -> (i32, i32) {
    %c0_i32 = arith.constant 0 : i32
    %c0_i32_0 = arith.constant 0 : i32
    return %arg0, %c0_i32 : i32, i32
  }
  func.func @transform_1(%arg0: i32) -> (i32, i32) {
    %c0_i32 = arith.constant 0 : i32
    %c0_i32_0 = arith.constant 0 : i32
    %c0_i32_1 = arith.constant 0 : i32
    return %c0_i32, %c0_i32_0 : i32, i32
  }
  func.func @transform_2(%arg0: i32) -> (i32, i32) {
    %c0_i32 = arith.constant 0 : i32
    %c0_i32_0 = arith.constant 0 : i32
    return %arg0, %c0_i32 : i32, i32
  }
}

</mosaic_0001>

<llo_original>
// kernel: tpu_custom_call.1
$region0: #{tpu_custom_call.1}
  #allocation0 [shape = 'u32[]', space=smem, size = 0x4, offset = 0x4, fixed_abs, tag = 'smem constant byte address 0x4 - core index']
  #allocation1 [shape = 'u32[144,128]{1,0:T(1,128)}', space=vmem, size = 0x12000, scoped, tag = 'internal scratch']
  %s0 = inlined_call_operand.hbm [shape: f32[8,32], index: 0, kind: input, shape index: {}]
  %s1 = inlined_call_operand.hbm [shape: f32[32,32], index: 1, kind: input, shape index: {}]
  %s2 = inlined_call_operand.hbm [shape: f32[8,32], index: 2, kind: output, shape index: {}]
  %s3 = sld [smem:[#allocation0]]
  $region26: #{tpu_custom_call.1} parent=0
    _
  %s5 = ssub.s32 1, %s3
  %s6 = scalar_select 0, %s5, %s3
  $region1: #{tpu_custom_call.1} parent=0
    #allocation2 [shape = 'u8[4096]{0}', space=vmem, size = 0x1000, scoped, tag = 'input window, operand 0, single buffered']
    #allocation3 [shape = 's32[1]{0}', space=sflag, size = 0x4, scoped, tag = 'scoped memory for tpu_custom_call.1']
    #allocation4 [shape = 's32[1]{0}', space=sflag, size = 0x4, scoped, tag = 'scoped memory for tpu_custom_call.1']
    #allocation5 [shape = 'u8[16384]{0}', space=vmem, size = 0x4000, scoped, tag = 'input window, operand 1, single buffered']
    #allocation6 [shape = 's32[1]{0}', space=sflag, size = 0x4, scoped, tag = 'scoped memory for tpu_custom_call.1']
    #allocation7 [shape = 'u8[4096]{0}', space=vmem, size = 0x1000, scoped, tag = 'output window, operand 0, single buffered']
    %7 = vsyncpa [#allocation3], 0
    %8 = vsyncpa [#allocation6], 0
    %9 = vsyncpa [#allocation4], 0
    // Predicated region
    $region2: #{tpu_custom_call.1} parent=1 // pred_check
      _
    $region3: #{tpu_custom_call.1} parent=1 // pred_check_branch
      %11 = sbr.rel (0) target = $region5
    $region4: #{tpu_custom_call.1} parent=1 // pred_region
      %s13 = ssub.s32 128, 128
      %14 = vsyncadd [#allocation3], %s13
      %s16 = sshll.u32 [#allocation2], 4
      %s17 = int_to_ptr.vmem [resolvable:$true] %s16
      %19 = dma.hbm_to_vmem [thread:$0]  %s0, 128, %s17, [#allocation3]
    $region5: #{tpu_custom_call.1} parent=1 // pred_fallthru
      _
    // Predicated region
    $region6: #{tpu_custom_call.1} parent=1 // pred_check
      _
    $region7: #{tpu_custom_call.1} parent=1 // pred_check_branch
      %21 = sbr.rel (0) target = $region9
    $region8: #{tpu_custom_call.1} parent=1 // pred_region
      %s23 = ssub.s32 512, 512
      %24 = vsyncadd [#allocation6], %s23
      %s25 = sshll.u32 [#allocation5], 4
      %s26 = int_to_ptr.vmem [resolvable:$true] %s25
      %31 = dma.hbm_to_vmem [thread:$0]  %s1, 512, %s26, [#allocation6], 128, 128, 8
    $region9: #{tpu_custom_call.1} parent=1 // pred_fallthru
      _
    // Predicated region
    $region10: #{tpu_custom_call.1} parent=1 // pred_check
      _
    $region11: #{tpu_custom_call.1} parent=1 // pred_check_branch
      %33 = sbr.rel (0) target = $region13
    $region12: #{tpu_custom_call.1} parent=1 // pred_region
      %34 = dma.done [#allocation3], 128
    $region13: #{tpu_custom_call.1} parent=1 // pred_fallthru
      _
    // Predicated region
    $region14: #{tpu_custom_call.1} parent=1 // pred_check
      _
    $region15: #{tpu_custom_call.1} parent=1 // pred_check_branch
      %36 = sbr.rel (0) target = $region17
    $region16: #{tpu_custom_call.1} parent=1 // pred_region
      %37 = dma.done [#allocation6], 512
    $region17: #{tpu_custom_call.1} parent=1 // pred_fallthru
      _
    %v38 = vld [vmem:[#allocation2] sm:$0xff]
    %v39 = vld [vmem:[#allocation5] sm:$0xff]
    %v40 = vld [vmem:[#allocation5 + $0x8] sm:$0xff]
    %v41 = vld [vmem:[#allocation5 + $0x10] sm:$0xff]
    %v42 = vld [vmem:[#allocation5 + $0x18] sm:$0xff]
    %vm43 = vcmask 261120
    %v45 = vsel %vm43, %v38, 0
    %47 = vmatprep.subr.mxu0 0.0
    %48 = vmatpush1.msra.mxu0 %v39
    %49 = vmatprep.subr.mxu0 0.0
    %50 = vmatpush1.msra.mxu0 %v40
    %51 = vmatprep.subr.mxu0 0.0
    %52 = vmatpush1.msra.mxu0 %v41
    %53 = vmatprep.subr.mxu0 0.0
    %54 = vmatpush1.msra.mxu0 %v42
    %55 = vmatprep.subr.mxu0 0.0
    %56 = vmatpush1.msra.mxu0 0.0
    %57 = vmatprep.subr.mxu0 0.0
    %58 = vmatpush1.msra.mxu0 0.0
    %59 = vmatprep.subr.mxu0 0.0
    %60 = vmatpush1.msra.mxu0 0.0
    %61 = vmatprep.subr.mxu0 0.0
    %62 = vmatpush1.msra.mxu0 0.0
    %63 = vmatprep.subr.mxu0 0.0
    %64 = vmatpush1.msra.mxu0 0.0
    %65 = vmatprep.subr.mxu0 0.0
    %66 = vmatpush1.msra.mxu0 0.0
    %67 = vmatprep.subr.mxu0 0.0
    %68 = vmatpush1.msra.mxu0 0.0
    %69 = vmatprep.subr.mxu0 0.0
    %70 = vmatpush1.msra.mxu0 0.0
    %71 = vmatprep.subr.mxu0 0.0
    %72 = vmatpush1.msra.mxu0 0.0
    %73 = vmatprep.subr.mxu0 0.0
    %74 = vmatpush1.msra.mxu0 0.0
    %75 = vmatprep.subr.mxu0 0.0
    %76 = vmatpush1.msra.mxu0 0.0
    %77 = vmatprep.subr.mxu0 0.0
    %78 = vmatpush1.msra.mxu0 0.0
    %79 = vmatprep.subr.mxu0 0.0
    %80 = vmatpush1.msra.mxu0 0.0
    %81 = vmatprep.subr.mxu0 0.0
    %82 = vmatpush1.msra.mxu0 0.0
    %83 = vmatprep.subr.mxu0 0.0
    %84 = vmatpush1.msra.mxu0 0.0
    %85 = vmatprep.subr.mxu0 0.0
    %86 = vmatpush1.msra.mxu0 0.0
    %87 = vmatprep.subr.mxu0 0.0
    %88 = vmatpush1.msra.mxu0 0.0
    %89 = vmatprep.subr.mxu0 0.0
    %90 = vmatpush1.msra.mxu0 0.0
    %91 = vmatprep.subr.mxu0 0.0
    %92 = vmatpush1.msra.mxu0 0.0
    %93 = vmatprep.subr.mxu0 0.0
    %94 = vmatpush1.msra.mxu0 0.0
    %95 = vmatprep.subr.mxu0 0.0
    %96 = vmatpush1.msra.mxu0 0.0
    %97 = vmatprep.subr.mxu0 0.0
    %98 = vmatpush1.msra.mxu0 0.0
    %99 = vmatprep.subr.mxu0 0.0
    %100 = vmatpush1.msra.mxu0 0.0
    %101 = vmatprep.subr.mxu0 0.0
    %102 = vmatpush1.msra.mxu0 0.0
    %103 = vmatprep.subr.mxu0 0.0
    %104 = vmatpush1.msra.mxu0 0.0
    %105 = vmatprep.subr.mxu0 0.0
    %106 = vmatpush1.msra.mxu0 0.0
    %107 = vmatprep.subr.mxu0 0.0
    %108 = vmatpush1.msra.mxu0 0.0
    %109 = vmatprep.subr.mxu0 0.0
    %110 = vmatpush1.msra.mxu0 0.0
    %111 = vmatprep.mubr.f32.mxu0 0.0
    %112 = vmatmul.mubr.f32.gmra.mrb[0].mxu0 %v45
    %v113 = vpop.f32.mrb[0].mxu0
    %v114 = vadd.f32 0.0, %v113
    %v115 = vpop.f32.mrb[0].mxu0
    %116 = vdwg.mxu0
    %117 = vst.msk [vmem:[#allocation7] sm:$0xff] %vm43, %v114
    // Predicated region
    $region18: #{tpu_custom_call.1} parent=1 // pred_check
      _
    $region19: #{tpu_custom_call.1} parent=1 // pred_check_branch
      %119 = sbr.rel (0) target = $region21
    $region20: #{tpu_custom_call.1} parent=1 // pred_region
      %s121 = ssub.s32 128, 128
      %122 = vsyncadd [#allocation4], %s121
      %s124 = sshll.u32 [#allocation7], 4
      %s125 = int_to_ptr.vmem [resolvable:$true] %s124
      %127 = dma.vmem_to_hbm [thread:$0]  %s125, 128, %s2, [#allocation4]
    $region21: #{tpu_custom_call.1} parent=1 // pred_fallthru
      _
    // Predicated region
    $region22: #{tpu_custom_call.1} parent=1 // pred_check
      _
    $region23: #{tpu_custom_call.1} parent=1 // pred_check_branch
      %129 = sbr.rel (0) target = $region25
    $region24: #{tpu_custom_call.1} parent=1 // pred_region
      %130 = dma.done [#allocation4], 128
    $region25: #{tpu_custom_call.1} parent=1 // pred_fallthru
      _
    %131 = vsyncpa [#allocation3], 1
    %132 = vsyncpa [#allocation6], 1
    %133 = vsyncpa [#allocation4], 1

</llo_original>
